<compile_context>
chip_gen: v7x
topology: tpu7x:2x2x1
jax: 0.10.0
libtpu: 0.0.40
codegen_flags: <defaults>
</compile_context>

<pallas_src>
import jax
import jax.numpy as jnp
from jax.experimental import pallas as pl
from jax.experimental.pallas import tpu as pltpu


def _linear_add_kernel(x1_ref, wt_ref, b_ref, x2_ref, o_ref, acc_ref):
    """One (TM, TN) output tile, accumulated over the K grid axis.

    x1_ref: (TM, TK)    wt_ref: (TK, TN)   (weight already transposed -> MXU-native RHS)
    b_ref:  (1, TN)     x2_ref: (TM or 1, TN or 1)
    o_ref:  (TM, TN)    acc_ref: (TM, TN) f32 VMEM scratch
    """
    k = pl.program_id(2)

    @pl.when(k == 0)
    def _():
        acc_ref[...] = jnp.zeros_like(acc_ref)

    acc_ref[...] += jax.lax.dot_general(
        x1_ref[...], wt_ref[...],
        dimension_numbers=(((1,), (0,)), ((), ())),   # (TM,TK) x (TK,TN) -> (TM,TN)
        preferred_element_type=jnp.float32,
    )

    @pl.when(k == pl.num_programs(2) - 1)
    def _():
        out = (acc_ref[...]
               + b_ref[...].astype(jnp.float32)
               + x2_ref[...].astype(jnp.float32))
        o_ref[...] = out.astype(o_ref.dtype)


def _vmem_capacity_bytes(default=64 << 20):
    """Per-TensorCore VMEM; falls back to the smallest (v7x) if query fails."""
    try:
        info = pltpu.get_tpu_info()
        cap = int(getattr(info, "vmem_capacity_bytes", 0) or 0)
        if cap > 0:
            return cap
    except Exception:
        pass
    return default


def _choose_tiles(M, d_in, d_out, bpe_in, bpe_w, bpe_x2, bpe_out,
                  x2_rows, x2_cols, budget):
    """Largest (tm, tn) (by HBM-traffic metric 1/tm + 1/tn), then largest tk,
    whose double-buffered footprint fits the VMEM budget."""
    tm_cands = [M] if M <= 512 else [512, 256, 128, 64, 32, 16, 8]
    tn_cands = [d_out] if d_out <= 512 else [512, 384, 256, 128]
    # K tile must divide d_in (padded-K garbage would corrupt valid outputs);
    # full-K first so gk == 1 keeps one operand DMA-deduped.
    tk_cands = [d_in] + [t for t in (2048, 1024, 512, 256, 128)
                         if t < d_in and d_in % t == 0]

    def footprint(tm, tn, tk):
        x2r = tm if x2_rows != 1 else 1
        x2c = tn if x2_cols != 1 else 1
        dbl = 2 * (tm * tk * bpe_in        # x1 tile
                   + tk * tn * bpe_w       # weight tile
                   + x2r * x2c * bpe_x2    # x2 tile
                   + tn * bpe_w            # bias tile
                   + tm * tn * bpe_out)    # output tile
        return dbl + tm * tn * 4           # + f32 accumulator scratch

    pairs = sorted(((tm, tn) for tm in tm_cands for tn in tn_cands),
                   key=lambda p: (1.0 / p[0] + 1.0 / p[1], -(p[0] * p[1])))
    for tm, tn in pairs:
        for tk in tk_cands:
            if footprint(tm, tn, tk) <= budget:
                return tm, tn, tk
    return pairs[-1][0], pairs[-1][1], tk_cands[-1]


def model_forward(x1, x2, weight, bias):
    """Pallas equivalent of: v1 = Linear(x1); v2 = v1 + x2.

    x1:     (B, S, d_in)
    x2:     broadcastable against (B, S, d_out)
    weight: (d_out, d_in)   (torch.nn.Linear layout)
    bias:   (d_out,)
    """
    B, S, d_in = x1.shape
    d_out = weight.shape[0]
    M = B * S

    x1f = x1.reshape(M, d_in)
    # One-time layout change to the MXU-native (K, N) RHS; in a real model the
    # parameter would be stored in this layout (done once, not per step).
    wt = weight.T                       # (d_in, d_out)
    b2 = bias.reshape(1, d_out)

    # --- x2: express the broadcast through the BlockSpec, don't materialize. ---
    x2a = jnp.asarray(x2)
    if x2a.ndim < 3:
        x2a = x2a.reshape((1,) * (3 - x2a.ndim) + x2a.shape)
    xb, xs, xn = x2a.shape
    if xb == B and xs == S:
        x2f = x2a.reshape(M, xn)
    elif xb == 1 and xs == 1:
        x2f = x2a.reshape(1, xn)
    else:
        # Mixed row broadcast (e.g. (B,1,n)): rare, fall back to materializing.
        x2f = jnp.broadcast_to(x2a, (B, S, xn)).reshape(M, xn)
    x2_rows, x2_cols = x2f.shape

    out_dtype = jnp.result_type(x1.dtype, weight.dtype, bias.dtype, x2f.dtype)
    # NOTE: on v6e/v7x, feeding x1/weight as bf16 (keeping f32 accumulation)
    # roughly halves HBM traffic; dtypes are preserved here to match torch.

    # --- Per-generation VMEM budget and tile selection. ---
    vmem_cap = _vmem_capacity_bytes()
    vmem_limit = min(int(vmem_cap * 0.75), 100 << 20)   # ~48 MiB v7x, ~96 MiB v5e/v6e
    budget = int(vmem_limit * 0.85)                      # headroom for internal scratch

    bpe_in = jnp.dtype(x1.dtype).itemsize
    bpe_w = jnp.dtype(weight.dtype).itemsize
    bpe_x2 = jnp.dtype(x2f.dtype).itemsize
    bpe_out = jnp.dtype(out_dtype).itemsize
    tm, tn, tk = _choose_tiles(M, d_in, d_out, bpe_in, bpe_w, bpe_x2, bpe_out,
                               x2_rows, x2_cols, budget)

    gm, gn, gk = pl.cdiv(M, tm), pl.cdiv(d_out, tn), pl.cdiv(d_in, tk)

    # Megacore (v7x has 2 TCs): a (1,1) parallel grid idles one core. Split one
    # parallel axis in two for non-trivial problems (skip tiny launch-bound ones).
    if gm == 1 and gn == 1 and (M * d_in * d_out) >= (1 << 24):
        if d_out >= 256:
            tn = ((d_out + 1) // 2 + 127) // 128 * 128
        elif M >= 16:
            tm = ((M + 1) // 2 + 7) // 8 * 8
        gm, gn = pl.cdiv(M, tm), pl.cdiv(d_out, tn)

    # Grid order: with K untiled the operand whose block index is constant
    # along the inner axis is DMA-deduped; pick the order with less HBM traffic.
    bytes_x1 = M * d_in * bpe_in
    bytes_w = d_in * d_out * bpe_w
    if gk == 1:
        m_outer = (bytes_x1 + gm * bytes_w) <= (gn * bytes_x1 + bytes_w)
    else:
        m_outer = True

    r_b = (x2_rows != 1)   # x2 varies along rows?
    c_b = (x2_cols != 1)   # x2 varies along cols?
    x2_block = (tm if r_b else 1, tn if c_b else 1)

    if m_outer:
        grid = (gm, gn, gk)
        x1_map = lambda i, j, k: (i, k)
        wt_map = lambda i, j, k: (k, j)
        b_map = lambda i, j, k: (0, j)
        out_map = lambda i, j, k: (i, j)
        x2_map = lambda i, j, k: (i if r_b else 0, j if c_b else 0)
    else:
        grid = (gn, gm, gk)
        x1_map = lambda j, i, k: (i, k)
        wt_map = lambda j, i, k: (k, j)
        b_map = lambda j, i, k: (0, j)
        out_map = lambda j, i, k: (i, j)
        x2_map = lambda j, i, k: (i if r_b else 0, j if c_b else 0)

    out = pl.pallas_call(
        _linear_add_kernel,
        out_shape=jax.ShapeDtypeStruct((M, d_out), out_dtype),
        grid_spec=pltpu.PrefetchScalarGridSpec(
            num_scalar_prefetch=0,
            grid=grid,
            in_specs=[
                pl.BlockSpec((tm, tk), x1_map),    # x1 tile
                pl.BlockSpec((tk, tn), wt_map),    # weight tile (already (K,N))
                pl.BlockSpec((1, tn), b_map),      # bias tile
                pl.BlockSpec(x2_block, x2_map),    # x2 tile (broadcast-aware)
            ],
            out_specs=pl.BlockSpec((tm, tn), out_map),
            scratch_shapes=[pltpu.VMEM((tm, tn), jnp.float32)],
        ),
        compiler_params=pltpu.CompilerParams(
            dimension_semantics=("parallel", "parallel", "arbitrary"),
            vmem_limit_bytes=vmem_limit,
        ),
    )(x1f, wt, b2, x2f)

    return out.reshape(B, S, d_out)


if __name__ == "__main__":
    # Small shapes consistent with the module's forward:
    # Linear(d_in -> d_out) on the last axis of x1, then + x2.
    # d_out = 128 keeps the output stores lane-dense; production tuning should
    # use large M / d_in / d_out (these demo shapes are launch-overhead bound).
    B, S, d_in, d_out = 2, 8, 32, 128

    key = jax.random.PRNGKey(0)
    k1, k2, kw, kb = jax.random.split(key, 4)

    x1 = jax.random.normal(k1, (B, S, d_in), dtype=jnp.float32)
    x2 = jax.random.normal(k2, (B, S, d_out), dtype=jnp.float32)

    # torch.nn.Linear-style uniform init, deterministic.
    bound = 1.0 / (d_in ** 0.5)
    weight = jax.random.uniform(kw, (d_out, d_in), minval=-bound, maxval=bound,
                                dtype=jnp.float32)
    bias = jax.random.uniform(kb, (d_out,), minval=-bound, maxval=bound,
                              dtype=jnp.float32)

    out = model_forward(x1, x2, weight, bias)
    jax.block_until_ready(out)

    # Pure-JAX reference check.
    ref = jnp.einsum("bsd,od->bso", x1, weight) + bias + x2
    assert out.shape == (B, S, d_out)
    assert jnp.allclose(out, ref, atol=1e-5, rtol=1e-5)

    print("KERNEL_OK")
</pallas_src>

<mosaic_0001>
module attributes {stable_mosaic.version = 11 : i64} {
  func.func @_linear_add_kernel(%arg0: i32, %arg1: i32, %arg2: i32, %arg3: memref<16x32xf32, #tpu.memory_space<vmem>>, %arg4: memref<32x128xf32, #tpu.memory_space<vmem>>, %arg5: memref<1x128xf32, #tpu.memory_space<vmem>>, %arg6: memref<16x128xf32, #tpu.memory_space<vmem>>, %arg7: memref<16x128xf32, #tpu.memory_space<vmem>>, %arg8: memref<16x128xf32, #tpu.memory_space<vmem>>) attributes {dimension_semantics = [#tpu.dimension_semantics<parallel>, #tpu.dimension_semantics<parallel>, #tpu.dimension_semantics<arbitrary>], iteration_bounds = array<i64: 1, 1, 1>, scalar_prefetch = 0 : i64, scratch_operands = 1 : i64, tpu.core_type = #tpu.core_type<tc>, window_params = [{transform_indices = @transform_0, window_bounds = array<i64: 16, 32>}, {transform_indices = @transform_1, window_bounds = array<i64: 32, 128>}, {transform_indices = @transform_2, window_bounds = array<i64: 1, 128>}, {transform_indices = @transform_3, window_bounds = array<i64: 16, 128>}, {transform_indices = @transform_4, window_bounds = array<i64: 16, 128>}]} {
    %c0_i32 = arith.constant 0 : i32
    %0 = arith.cmpi eq, %arg2, %c0_i32 : i32
    %1 = arith.extui %0 : i1 to i32
    %c0_i32_0 = arith.constant 0 : i32
    %2 = arith.cmpi ne, %1, %c0_i32_0 : i32
    scf.if %2 {
      %cst_10 = arith.constant 0.000000e+00 : f32
      %12 = vector.broadcast %cst_10 : f32 to vector<16x128xf32>
      %c0_11 = arith.constant 0 : index
      %c0_12 = arith.constant 0 : index
      %13 = vector.load %arg8[%c0_11, %c0_12] : memref<16x128xf32, #tpu.memory_space<vmem>>, vector<16x128xf32>
      tpu.vector_store %arg8[%c0_11, %c0_12], %12 {strides = array<i32>} : memref<16x128xf32, #tpu.memory_space<vmem>>, vector<16x128xf32>,
    } else {
    }
    %c0 = arith.constant 0 : index
    %c0_1 = arith.constant 0 : index
    %3 = vector.load %arg8[%c0, %c0_1] : memref<16x128xf32, #tpu.memory_space<vmem>>, vector<16x128xf32>
    %c0_2 = arith.constant 0 : index
    %c0_3 = arith.constant 0 : index
    %4 = vector.load %arg3[%c0_2, %c0_3] : memref<16x32xf32, #tpu.memory_space<vmem>>, vector<16x32xf32>
    %c0_4 = arith.constant 0 : index
    %c0_5 = arith.constant 0 : index
    %5 = vector.load %arg4[%c0_4, %c0_5] : memref<32x128xf32, #tpu.memory_space<vmem>>, vector<32x128xf32>
    %cst = arith.constant dense<0.000000e+00> : vector<16x128xf32>
    %6 = tpu.matmul %4, %5, %cst {dimension_numbers = #tpu.dot_dimension_numbers<[1], [0], [0], [1], [0, 0, 1, 1], [], []>} : vector<16x32xf32>, vector<32x128xf32>, vector<16x128xf32> -> vector<16x128xf32>
    %7 = arith.addf %3, %6 : vector<16x128xf32>
    %c0_6 = arith.constant 0 : index
    %c0_7 = arith.constant 0 : index
    %8 = vector.load %arg8[%c0_6, %c0_7] : memref<16x128xf32, #tpu.memory_space<vmem>>, vector<16x128xf32>
    tpu.vector_store %arg8[%c0_6, %c0_7], %7 {strides = array<i32>} : memref<16x128xf32, #tpu.memory_space<vmem>>, vector<16x128xf32>,
    %c0_i32_8 = arith.constant 0 : i32
    %9 = arith.cmpi eq, %arg2, %c0_i32_8 : i32
    %10 = arith.extui %9 : i1 to i32
    %c0_i32_9 = arith.constant 0 : i32
    %11 = arith.cmpi ne, %10, %c0_i32_9 : i32
    scf.if %11 {
      %c0_10 = arith.constant 0 : index
      %c0_11 = arith.constant 0 : index
      %12 = vector.load %arg8[%c0_10, %c0_11] : memref<16x128xf32, #tpu.memory_space<vmem>>, vector<16x128xf32>
      %c0_12 = arith.constant 0 : index
      %c0_13 = arith.constant 0 : index
      %13 = vector.load %arg5[%c0_12, %c0_13] : memref<1x128xf32, #tpu.memory_space<vmem>>, vector<1x128xf32>
      %14 = vector.broadcast %13 : vector<1x128xf32> to vector<16x128xf32>
      %15 = arith.addf %12, %14 : vector<16x128xf32>
      %c0_14 = arith.constant 0 : index
      %c0_15 = arith.constant 0 : index
      %16 = vector.load %arg6[%c0_14, %c0_15] : memref<16x128xf32, #tpu.memory_space<vmem>>, vector<16x128xf32>
      %17 = arith.addf %15, %16 : vector<16x128xf32>
      %c0_16 = arith.constant 0 : index
      %c0_17 = arith.constant 0 : index
      %18 = vector.load %arg7[%c0_16, %c0_17] : memref<16x128xf32, #tpu.memory_space<vmem>>, vector<16x128xf32>
      tpu.vector_store %arg7[%c0_16, %c0_17], %17 {strides = array<i32>} : memref<16x128xf32, #tpu.memory_space<vmem>>, vector<16x128xf32>,
    } else {
    }
    return
  }
  func.func @transform_0(%arg0: i32, %arg1: i32, %arg2: i32) -> (i32, i32) {
    %c0_i32 = arith.constant 0 : i32
    return %arg0, %arg2 : i32, i32
  }
  func.func @transform_1(%arg0: i32, %arg1: i32, %arg2: i32) -> (i32, i32) {
    %c0_i32 = arith.constant 0 : i32
    return %arg2, %arg1 : i32, i32
  }
  func.func @transform_2(%arg0: i32, %arg1: i32, %arg2: i32) -> (i32, i32) {
    %c0_i32 = arith.constant 0 : i32
    %c0_i32_0 = arith.constant 0 : i32
    return %c0_i32, %arg1 : i32, i32
  }
  func.func @transform_3(%arg0: i32, %arg1: i32, %arg2: i32) -> (i32, i32) {
    %c0_i32 = arith.constant 0 : i32
    return %arg0, %arg1 : i32, i32
  }
  func.func @transform_4(%arg0: i32, %arg1: i32, %arg2: i32) -> (i32, i32) {
    %c0_i32 = arith.constant 0 : i32
    return %arg0, %arg1 : i32, i32
  }
}

</mosaic_0001>

<llo_original>
// kernel: tpu_custom_call.1
$region0: #{tpu_custom_call.1}
  #allocation0 [shape = 'u32[]', space=smem, size = 0x4, offset = 0x4, fixed_abs, tag = 'smem constant byte address 0x4 - core index']
  #allocation1 [shape = 'u32[144,128]{1,0:T(1,128)}', space=vmem, size = 0x12000, scoped, tag = 'internal scratch']
  #allocation2 [shape = 'f32[16,128]{1,0:T(8,128)}', space=vmem, size = 0x2000, scoped, tag = 'scratch operand']
  %s0 = inlined_call_operand.hbm [shape: f32[16,32], index: 0, kind: input, shape index: {}]
  %s1 = inlined_call_operand.hbm [shape: f32[32,128], index: 1, kind: input, shape index: {}]
  %s2 = inlined_call_operand.vmem [shape: f32[1,128], index: 2, kind: input, shape index: {}]
  %s3 = inlined_call_operand.hbm [shape: f32[16,128], index: 3, kind: input, shape index: {}]
  %s4 = inlined_call_operand.hbm [shape: f32[16,128], index: 4, kind: output, shape index: {}]
  %s5 = sld [smem:[#allocation0]]
  $region46: #{tpu_custom_call.1} parent=0
    _
  %s7 = ssub.s32 1, %s5
  %s8 = scalar_select 0, %s7, %s5
  $region1: #{tpu_custom_call.1} parent=0
    #allocation3 [shape = 'u8[8192]{0}', space=vmem, size = 0x2000, scoped, tag = 'input window, operand 0, single buffered']
    #allocation4 [shape = 's32[1]{0}', space=sflag, size = 0x4, scoped, tag = 'scoped memory for tpu_custom_call.1']
    #allocation5 [shape = 's32[1]{0}', space=sflag, size = 0x4, scoped, tag = 'scoped memory for tpu_custom_call.1']
    #allocation6 [shape = 'u8[16384]{0}', space=vmem, size = 0x4000, scoped, tag = 'input window, operand 1, single buffered']
    #allocation7 [shape = 's32[1]{0}', space=sflag, size = 0x4, scoped, tag = 'scoped memory for tpu_custom_call.1']
    #allocation8 [shape = 'u8[8192]{0}', space=vmem, size = 0x2000, scoped, tag = 'input window, operand 3, single buffered']
    #allocation9 [shape = 'u8[8192]{0}', space=vmem, size = 0x2000, scoped, tag = 'output window, operand 0, single buffered']
    %9 = vsyncpa [#allocation4], 0
    %10 = vsyncpa [#allocation7], 0
    %11 = vsyncpa [#allocation5], 0
    // Predicated region
    $region2: #{tpu_custom_call.1} parent=1 // pred_check
      _
    $region3: #{tpu_custom_call.1} parent=1 // pred_check_branch
      %13 = sbr.rel (0) target = $region5
    $region4: #{tpu_custom_call.1} parent=1 // pred_region
      %s15 = ssub.s32 256, 256
      %16 = vsyncadd [#allocation4], %s15
      %s17 = sshll.u32 [#allocation3], 4
      %s18 = int_to_ptr.vmem [resolvable:$true] %s17
      %23 = dma.hbm_to_vmem [thread:$0]  %s0, 256, %s18, [#allocation4], 128, 128, 8
    $region5: #{tpu_custom_call.1} parent=1 // pred_fallthru
      _
    // Predicated region
    $region6: #{tpu_custom_call.1} parent=1 // pred_check
      _
    $region7: #{tpu_custom_call.1} parent=1 // pred_check_branch
      %25 = sbr.rel (0) target = $region9
    $region8: #{tpu_custom_call.1} parent=1 // pred_region
      %s27 = ssub.s32 512, 512
      %28 = vsyncadd [#allocation7], %s27
      %s29 = sshll.u32 [#allocation6], 4
      %s30 = int_to_ptr.vmem [resolvable:$true] %s29
      %35 = dma.hbm_to_vmem [thread:$0]  %s1, 512, %s30, [#allocation7], 128, 128, 8
    $region9: #{tpu_custom_call.1} parent=1 // pred_fallthru
      _
    // Predicated region
    $region10: #{tpu_custom_call.1} parent=1 // pred_check
      _
    $region11: #{tpu_custom_call.1} parent=1 // pred_check_branch
      %37 = sbr.rel (0) target = $region13
    $region12: #{tpu_custom_call.1} parent=1 // pred_region
      _
    $region13: #{tpu_custom_call.1} parent=1 // pred_fallthru
      _
    // Predicated region
    $region14: #{tpu_custom_call.1} parent=1 // pred_check
      _
    $region15: #{tpu_custom_call.1} parent=1 // pred_check_branch
      %39 = sbr.rel (0) target = $region17
    $region16: #{tpu_custom_call.1} parent=1 // pred_region
      %s41 = ssub.s32 256, 256
      %42 = vsyncadd [#allocation7], %s41
      %s43 = sshll.u32 [#allocation8], 4
      %s44 = int_to_ptr.vmem [resolvable:$true] %s43
      %49 = dma.hbm_to_vmem [thread:$0]  %s3, 256, %s44, [#allocation7], 128, 128, 8
    $region17: #{tpu_custom_call.1} parent=1 // pred_fallthru
      _
    // Predicated region
    $region18: #{tpu_custom_call.1} parent=1 // pred_check
      _
    $region19: #{tpu_custom_call.1} parent=1 // pred_check_branch
      %51 = sbr.rel (0) target = $region21
    $region20: #{tpu_custom_call.1} parent=1 // pred_region
      %52 = dma.done [#allocation4], 256
    $region21: #{tpu_custom_call.1} parent=1 // pred_fallthru
      _
    // Predicated region
    $region22: #{tpu_custom_call.1} parent=1 // pred_check
      _
    $region23: #{tpu_custom_call.1} parent=1 // pred_check_branch
      %54 = sbr.rel (0) target = $region25
    $region24: #{tpu_custom_call.1} parent=1 // pred_region
      %55 = dma.done [#allocation7], 512
    $region25: #{tpu_custom_call.1} parent=1 // pred_fallthru
      _
    // Predicated region
    $region26: #{tpu_custom_call.1} parent=1 // pred_check
      _
    $region27: #{tpu_custom_call.1} parent=1 // pred_check_branch
      %57 = sbr.rel (0) target = $region29
    $region28: #{tpu_custom_call.1} parent=1 // pred_region
      %58 = dma.done [#allocation7], 256
    $region29: #{tpu_custom_call.1} parent=1 // pred_fallthru
      _
    %p59 = scmp.eq.s32.totalorder 0, 0
    // Predicated region
    $region30: #{tpu_custom_call.1} parent=1 // pred_check
      %p60 = pneg %p59
    $region31: #{tpu_custom_call.1} parent=1 // pred_check_branch
      %62 = sbr.rel (%p60) target = $region33
    $region32: #{tpu_custom_call.1} parent=1 // pred_region
      %63 = vst [vmem:[#allocation2] sm:$0xff] 0.0
      %64 = vst [vmem:[#allocation2 + $0x8] sm:$0xff] 0.0
    $region33: #{tpu_custom_call.1} parent=1 // pred_fallthru
      _
    %v65 = vld [vmem:[#allocation2] sm:$0xff]
    %v66 = vld [vmem:[#allocation2 + $0x8] sm:$0xff]
    %v67 = vld [vmem:[#allocation3] sm:$0xff]
    %v68 = vld [vmem:[#allocation3 + $0x8] sm:$0xff]
    %v69 = vld [vmem:[#allocation6] sm:$0xff]
    %v70 = vld [vmem:[#allocation6 + $0x8] sm:$0xff]
    %v71 = vld [vmem:[#allocation6 + $0x10] sm:$0xff]
    %v72 = vld [vmem:[#allocation6 + $0x18] sm:$0xff]
    %vm73 = vcmask 261120
    %v75 = vsel %vm73, %v67, 0
    %v78 = vsel %vm73, %v68, 0
    %80 = vmatprep.subr.mxu0 0.0
    %81 = vmatpush1.msra.mxu0 %v69
    %82 = vmatprep.subr.mxu0 0.0
    %83 = vmatpush1.msra.mxu0 %v70
    %84 = vmatprep.subr.mxu0 0.0
    %85 = vmatpush1.msra.mxu0 %v71
    %86 = vmatprep.subr.mxu0 0.0
    %87 = vmatpush1.msra.mxu0 %v72
    %88 = vmatprep.subr.mxu0 0.0
    %89 = vmatpush1.msra.mxu0 0.0
    %90 = vmatprep.subr.mxu0 0.0
    %91 = vmatpush1.msra.mxu0 0.0
    %92 = vmatprep.subr.mxu0 0.0
    %93 = vmatpush1.msra.mxu0 0.0
    %94 = vmatprep.subr.mxu0 0.0
    %95 = vmatpush1.msra.mxu0 0.0
    %96 = vmatprep.subr.mxu0 0.0
    %97 = vmatpush1.msra.mxu0 0.0
    %98 = vmatprep.subr.mxu0 0.0
    %99 = vmatpush1.msra.mxu0 0.0
    %100 = vmatprep.subr.mxu0 0.0
    %101 = vmatpush1.msra.mxu0 0.0
    %102 = vmatprep.subr.mxu0 0.0
    %103 = vmatpush1.msra.mxu0 0.0
    %104 = vmatprep.subr.mxu0 0.0
    %105 = vmatpush1.msra.mxu0 0.0
    %106 = vmatprep.subr.mxu0 0.0
    %107 = vmatpush1.msra.mxu0 0.0
    %108 = vmatprep.subr.mxu0 0.0
    %109 = vmatpush1.msra.mxu0 0.0
    %110 = vmatprep.subr.mxu0 0.0
    %111 = vmatpush1.msra.mxu0 0.0
    %112 = vmatprep.subr.mxu0 0.0
    %113 = vmatpush1.msra.mxu0 0.0
    %114 = vmatprep.subr.mxu0 0.0
    %115 = vmatpush1.msra.mxu0 0.0
    %116 = vmatprep.subr.mxu0 0.0
    %117 = vmatpush1.msra.mxu0 0.0
    %118 = vmatprep.subr.mxu0 0.0
    %119 = vmatpush1.msra.mxu0 0.0
    %120 = vmatprep.subr.mxu0 0.0
    %121 = vmatpush1.msra.mxu0 0.0
    %122 = vmatprep.subr.mxu0 0.0
    %123 = vmatpush1.msra.mxu0 0.0
    %124 = vmatprep.subr.mxu0 0.0
    %125 = vmatpush1.msra.mxu0 0.0
    %126 = vmatprep.subr.mxu0 0.0
    %127 = vmatpush1.msra.mxu0 0.0
    %128 = vmatprep.subr.mxu0 0.0
    %129 = vmatpush1.msra.mxu0 0.0
    %130 = vmatprep.subr.mxu0 0.0
    %131 = vmatpush1.msra.mxu0 0.0
    %132 = vmatprep.subr.mxu0 0.0
    %133 = vmatpush1.msra.mxu0 0.0
    %134 = vmatprep.subr.mxu0 0.0
    %135 = vmatpush1.msra.mxu0 0.0
    %136 = vmatprep.subr.mxu0 0.0
    %137 = vmatpush1.msra.mxu0 0.0
    %138 = vmatprep.subr.mxu0 0.0
    %139 = vmatpush1.msra.mxu0 0.0
    %140 = vmatprep.subr.mxu0 0.0
    %141 = vmatpush1.msra.mxu0 0.0
    %142 = vmatprep.subr.mxu0 0.0
    %143 = vmatpush1.msra.mxu0 0.0
    %144 = vmatprep.mubr.f32.mxu0 0.0
    %145 = vmatmul.mubr.f32.gmra.mrb[0].mxu0 %v75
    %v146 = vpop.f32.mrb[0].mxu0
    %v147 = vadd.f32 0.0, %v146
    %v148 = vpop.f32.mrb[0].mxu0
    %149 = vmatprep.mubr.f32.mxu0 0.0
    %150 = vmatmul.mubr.f32.gmra.mrb[0].mxu0 %v78
    %v151 = vpop.f32.mrb[0].mxu0
    %v152 = vadd.f32 0.0, %v151
    %v153 = vpop.f32.mrb[0].mxu0
    %154 = vdwg.mxu0
    %v155 = vadd.f32 %v65, %v147
    %v156 = vadd.f32 %v66, %v152
    %157 = vst [vmem:[#allocation2] sm:$0xff] %v155
    %158 = vst [vmem:[#allocation2 + $0x8] sm:$0xff] %v156
    // Predicated region
    $region34: #{tpu_custom_call.1} parent=1 // pred_check
      %p159 = pneg %p59
    $region35: #{tpu_custom_call.1} parent=1 // pred_check_branch
      %161 = sbr.rel (%p159) target = $region37
    $region36: #{tpu_custom_call.1} parent=1 // pred_region
      %v162 = vld [vmem:[#allocation2] sm:$0xff]
      %v163 = vld [vmem:[#allocation2 + $0x8] sm:$0xff]
      %v164 = vld [vmem:[%s2] sm:$0x1]
      %v166 = vlaneseq
      %v167 = vshrl.u32 %v166, 7
      %v168 = vsub.s32 0, %v167
      %v169 = vrot.slane %v164, %v168
      %v171 = vadd.f32 %v162, %v169
      %v172 = vadd.f32 %v163, %v169
      %v173 = vld [vmem:[#allocation8] sm:$0xff]
      %v174 = vld [vmem:[#allocation8 + $0x8] sm:$0xff]
      %v175 = vadd.f32 %v171, %v173
      %v176 = vadd.f32 %v172, %v174
      %177 = vst [vmem:[#allocation9] sm:$0xff] %v175
      %178 = vst [vmem:[#allocation9 + $0x8] sm:$0xff] %v176
    $region37: #{tpu_custom_call.1} parent=1 // pred_fallthru
      _
    // Predicated region
    $region38: #{tpu_custom_call.1} parent=1 // pred_check
      _
    $region39: #{tpu_custom_call.1} parent=1 // pred_check_branch
      %180 = sbr.rel (0) target = $region41
    $region40: #{tpu_custom_call.1} parent=1 // pred_region
      %s182 = ssub.s32 256, 256
      %183 = vsyncadd [#allocation5], %s182
      %s184 = sshll.u32 [#allocation9], 4
      %s185 = int_to_ptr.vmem [resolvable:$true] %s184
      %190 = dma.vmem_to_hbm [thread:$0]  %s185, 256, %s4, [#allocation5], 128, 128, 8
    $region41: #{tpu_custom_call.1} parent=1 // pred_fallthru
      _
    // Predicated region
    $region42: #{tpu_custom_call.1} parent=1 // pred_check
      _
    $region43: #{tpu_custom_call.1} parent=1 // pred_check_branch
      %192 = sbr.rel (0) target = $region45
    $region44: #{tpu_custom_call.1} parent=1 // pred_region
      %193 = dma.done [#allocation5], 256
    $region45: #{tpu_custom_call.1} parent=1 // pred_fallthru
      _
    %194 = vsyncpa [#allocation4], 1
    %195 = vsyncpa [#allocation7], 1
    %196 = vsyncpa [#allocation5], 1

</llo_original>
